<compile_context>
chip_gen: v6e
topology: v6e:2x2x1
jax: 0.10.0
libtpu: 0.0.40
codegen_flags: <defaults>
</compile_context>

<pallas_src>
import functools

import jax
import jax.numpy as jnp
from jax.experimental import pallas as pl
from jax.experimental.pallas import tpu as pltpu

EPS = 1e-5
MOMENTUM = 0.1
SQRT2 = 1.4142135623730951


def _pick_channel_tile(B, C, L, budget_bytes=12 << 20):
    """Largest channel tile whose double-buffered blocks fit a conservative
    VMEM budget (safe even on v5e's 16 MiB scoped default)."""
    # (2 inputs + 2 outputs) f32 planes per channel, double-buffered.
    per_channel_bytes = 4 * B * L * 4 * 2
    max_tc = max(1, budget_bytes // per_channel_bytes)
    if C <= max_tc:
        return C
    cands = [tc for tc in range(8, C, 8) if C % tc == 0 and tc <= max_tc]
    return max(cands) if cands else C


def _reduce_bl(v):
    """Sum a (B, tc, L) tile over (batch, length) -> (1, tc, 1)."""
    return jnp.sum(jnp.sum(v, axis=2, keepdims=True), axis=0, keepdims=True)


def _cbn1d_kernel(xr_ref, xi_ref, p_ref, or_ref, oi_ref, st_ref):
    """One channel-tile of complex batch-norm (stats + whiten + affine).

    xr_ref, xi_ref : (B, tc, L)  real / imag planes
    p_ref          : (tc, 8)     packed params [Wrr, Wii, Wri, b_r, b_i, 0, 0, 0]
    or_ref, oi_ref : (B, tc, L)  output real / imag planes
    st_ref         : (tc, 8)     batch stats [mean_r, mean_i, Crr, Cii, Cri, 0, 0, 0]
    """
    xr = xr_ref[...]
    xi = xi_ref[...]
    n = xr.shape[0] * xr.shape[2]
    inv_n = 1.0 / n

    # ---- single pass of raw moments over (batch, length) -> (1, tc, 1) -----
    mean_r = _reduce_bl(xr) * inv_n
    mean_i = _reduce_bl(xi) * inv_n
    crr = _reduce_bl(xr * xr) * inv_n - mean_r * mean_r + EPS
    cii = _reduce_bl(xi * xi) * inv_n - mean_i * mean_i + EPS
    cri = _reduce_bl(xr * xi) * inv_n - mean_r * mean_i

    # ---- inverse square root of the per-channel 2x2 covariance -------------
    det = crr * cii - cri * cri
    s = jnp.sqrt(det)
    t = jnp.sqrt(crr + cii + 2.0 * s)
    inv_st = 1.0 / (s * t)  # only tc elements; keep exact for accuracy
    rrr = (cii + s) * inv_st
    rii = (crr + s) * inv_st
    rri = -cri * inv_st

    # ---- fold centering + whitening + affine into one 2x2 + offset ---------
    wrr = p_ref[:, 0:1][None, :, :]
    wii = p_ref[:, 1:2][None, :, :]
    wri = p_ref[:, 2:3][None, :, :]
    b_r = p_ref[:, 3:4][None, :, :]
    b_i = p_ref[:, 4:5][None, :, :]

    m00 = wrr * rrr + wri * rri
    m01 = wrr * rri + wri * rii
    m10 = wri * rrr + wii * rri
    m11 = wri * rri + wii * rii
    off_r = b_r - (m00 * mean_r + m01 * mean_i)
    off_i = b_i - (m10 * mean_r + m11 * mean_i)

    or_ref[...] = m00 * xr + m01 * xi + off_r
    oi_ref[...] = m10 * xr + m11 * xi + off_i

    # ---- export batch statistics as one lane-dense (tc, 8) store -----------
    lane = jax.lax.broadcasted_iota(jnp.int32, st_ref.shape, 1)
    st = jnp.where(lane == 0, mean_r[0], 0.0)
    st = jnp.where(lane == 1, mean_i[0], st)
    st = jnp.where(lane == 2, crr[0], st)
    st = jnp.where(lane == 3, cii[0], st)
    st = jnp.where(lane == 4, cri[0], st)
    st_ref[...] = st.astype(jnp.float32)


@functools.partial(jax.jit, static_argnames=("channel_tile",))
def complex_batchnorm1d(x, weight, bias, running_mean, running_covar,
                        channel_tile=None):
    """Training-mode forward of ComplexBatchNorm1d.

    x: (B, C, L) complex64.  Returns (output, new_running_mean, new_running_covar).
    """
    B, C, L = x.shape
    n = B * L

    xr = jnp.real(x).astype(jnp.float32)
    xi = jnp.imag(x).astype(jnp.float32)
    # TODO(synk): avoid the real/imag split + complex recombine round trips by
    # bitcasting complex64 <-> interleaved f32 and de-interleaving in-kernel.

    # Packed per-channel params -> one small DMA: [Wrr, Wii, Wri, b_r, b_i, 0, 0, 0]
    params = jnp.concatenate(
        [
            weight.astype(jnp.float32),
            jnp.real(bias).astype(jnp.float32)[:, None],
            jnp.imag(bias).astype(jnp.float32)[:, None],
            jnp.zeros((C, 3), jnp.float32),
        ],
        axis=1,
    )

    tc = channel_tile if channel_tile is not None else _pick_channel_tile(B, C, L)
    assert C % tc == 0, (C, tc)
    grid = (C // tc,)

    out_r, out_i, stats = pl.pallas_call(
        _cbn1d_kernel,
        out_shape=(
            jax.ShapeDtypeStruct((B, C, L), jnp.float32),
            jax.ShapeDtypeStruct((B, C, L), jnp.float32),
            jax.ShapeDtypeStruct((C, 8), jnp.float32),
        ),
        grid=grid,
        in_specs=[
            pl.BlockSpec((B, tc, L), lambda i: (0, i, 0)),
            pl.BlockSpec((B, tc, L), lambda i: (0, i, 0)),
            pl.BlockSpec((tc, 8), lambda i: (i, 0)),
        ],
        out_specs=[
            pl.BlockSpec((B, tc, L), lambda i: (0, i, 0)),
            pl.BlockSpec((B, tc, L), lambda i: (0, i, 0)),
            pl.BlockSpec((tc, 8), lambda i: (i, 0)),
        ],
        compiler_params=pltpu.CompilerParams(
            # Channel tiles are independent -> both TensorCores on v7x.
            dimension_semantics=("parallel",),
            vmem_limit_bytes=32 * 1024 * 1024,
        ),
    )(xr, xi, params)

    output = jax.lax.complex(out_r, out_i)

    # Running-stat EMA update (tiny per-channel glue; mirrors torch.no_grad block).
    eaf = MOMENTUM
    mean_c = jax.lax.complex(stats[:, 0], stats[:, 1])
    new_running_mean = eaf * mean_c + (1.0 - eaf) * running_mean
    unbias = float(n) / (float(n) - 1.0)
    new_running_covar = jnp.stack(
        [
            eaf * stats[:, 2] * unbias + (1.0 - eaf) * running_covar[:, 0],
            eaf * stats[:, 3] * unbias + (1.0 - eaf) * running_covar[:, 1],
            eaf * stats[:, 4] * unbias + (1.0 - eaf) * running_covar[:, 2],
        ],
        axis=1,
    )
    # TODO(synk): eval-mode path (normalize with running stats) not implemented in-kernel.
    return output, new_running_mean, new_running_covar


def _reference(x, weight, bias):
    """Pure-JAX reference mirroring the PyTorch training-mode forward."""
    mean = jnp.mean(x, axis=(0, 2))
    xc = x - mean[None, :, None]
    n = x.shape[0] * x.shape[2]
    xr, xi = jnp.real(xc), jnp.imag(xc)
    crr = jnp.sum(xr ** 2, axis=(0, 2)) / n + EPS
    cii = jnp.sum(xi ** 2, axis=(0, 2)) / n + EPS
    cri = jnp.mean(xr * xi, axis=(0, 2))
    det = crr * cii - cri ** 2
    s = jnp.sqrt(det)
    t = jnp.sqrt(cii + crr + 2 * s)
    inv_st = 1.0 / (s * t)
    rrr = (cii + s) * inv_st
    rii = (crr + s) * inv_st
    rri = -cri * inv_st
    yr = rrr[None, :, None] * xr + rri[None, :, None] * xi
    yi = rii[None, :, None] * xi + rri[None, :, None] * xr
    zr = weight[None, :, 0, None] * yr + weight[None, :, 2, None] * yi
    zi = weight[None, :, 2, None] * yr + weight[None, :, 1, None] * yi
    return jax.lax.complex(zr, zi) + bias[None, :, None]


if __name__ == "__main__":
    B, C, L = 2, 16, 128
    key = jax.random.PRNGKey(0)
    k1, k2, k3, k4, k5 = jax.random.split(key, 5)

    x = jax.lax.complex(
        jax.random.normal(k1, (B, C, L), dtype=jnp.float32),
        jax.random.normal(k2, (B, C, L), dtype=jnp.float32),
    )

    # Parameters: module init (sqrt(2), sqrt(2), 0 / zero bias) plus a small
    # deterministic perturbation so cross/affine terms are exercised.
    weight = jnp.concatenate(
        [jnp.full((C, 2), SQRT2, jnp.float32), jnp.zeros((C, 1), jnp.float32)],
        axis=1,
    ) + 0.1 * jax.random.normal(k3, (C, 3), dtype=jnp.float32)
    bias = jax.lax.complex(
        0.1 * jax.random.normal(k4, (C,), dtype=jnp.float32),
        0.1 * jax.random.normal(k5, (C,), dtype=jnp.float32),
    )

    # Running-stat buffers: module init values.
    running_mean = jnp.zeros((C,), dtype=jnp.complex64)
    running_covar = jnp.concatenate(
        [jnp.full((C, 2), SQRT2, jnp.float32), jnp.zeros((C, 1), jnp.float32)],
        axis=1,
    )

    # channel_tile=8 forces a multi-step grid (2 channel tiles) so the tiled /
    # pipelined path is exercised even at this small test size.
    out, new_rm, new_rc = complex_batchnorm1d(
        x, weight, bias, running_mean, running_covar, channel_tile=8)
    jax.block_until_ready((out, new_rm, new_rc))

    ref_out = _reference(x, weight, bias)
    assert out.shape == (B, C, L) and out.dtype == jnp.complex64
    assert jnp.allclose(jnp.real(out), jnp.real(ref_out), atol=1e-4, rtol=1e-4)
    assert jnp.allclose(jnp.imag(out), jnp.imag(ref_out), atol=1e-4, rtol=1e-4)

    # Running-stat EMA reference.
    n = float(B * L)
    mean_ref = jnp.mean(x, axis=(0, 2))
    xc = x - mean_ref[None, :, None]
    crr_ref = jnp.sum(jnp.real(xc) ** 2, axis=(0, 2)) / n + EPS
    cii_ref = jnp.sum(jnp.imag(xc) ** 2, axis=(0, 2)) / n + EPS
    cri_ref = jnp.mean(jnp.real(xc) * jnp.imag(xc), axis=(0, 2))
    rm_ref = MOMENTUM * mean_ref + (1.0 - MOMENTUM) * running_mean
    ub = n / (n - 1.0)
    rc_ref = jnp.stack(
        [
            MOMENTUM * crr_ref * ub + (1.0 - MOMENTUM) * running_covar[:, 0],
            MOMENTUM * cii_ref * ub + (1.0 - MOMENTUM) * running_covar[:, 1],
            MOMENTUM * cri_ref * ub + (1.0 - MOMENTUM) * running_covar[:, 2],
        ],
        axis=1,
    )
    assert jnp.allclose(new_rm, rm_ref, atol=1e-4, rtol=1e-3)
    assert jnp.allclose(new_rc, rc_ref, atol=1e-4, rtol=1e-3)

    print("KERNEL_OK")
</pallas_src>

<mosaic_0001>
module attributes {stable_mosaic.version = 11 : i64} {
  func.func @_cbn1d_kernel(%arg0: i32, %arg1: memref<2x8x128xf32, #tpu.memory_space<vmem>>, %arg2: memref<2x8x128xf32, #tpu.memory_space<vmem>>, %arg3: memref<8x8xf32, #tpu.memory_space<vmem>>, %arg4: memref<2x8x128xf32, #tpu.memory_space<vmem>>, %arg5: memref<2x8x128xf32, #tpu.memory_space<vmem>>, %arg6: memref<8x8xf32, #tpu.memory_space<vmem>>) attributes {dimension_semantics = [#tpu.dimension_semantics<parallel>], iteration_bounds = array<i64: 2>, scalar_prefetch = 0 : i64, scratch_operands = 0 : i64, tpu.core_type = #tpu.core_type<tc>, window_params = [{transform_indices = @transform_0, window_bounds = array<i64: 2, 8, 128>}, {transform_indices = @transform_1, window_bounds = array<i64: 2, 8, 128>}, {transform_indices = @transform_2, window_bounds = array<i64: 8, 8>}, {transform_indices = @transform_3, window_bounds = array<i64: 2, 8, 128>}, {transform_indices = @transform_4, window_bounds = array<i64: 2, 8, 128>}, {transform_indices = @transform_5, window_bounds = array<i64: 8, 8>}]} {
    %c0 = arith.constant 0 : index
    %c0_0 = arith.constant 0 : index
    %c0_1 = arith.constant 0 : index
    %0 = vector.load %arg1[%c0, %c0_0, %c0_1] : memref<2x8x128xf32, #tpu.memory_space<vmem>>, vector<2x8x128xf32>
    %c0_2 = arith.constant 0 : index
    %c0_3 = arith.constant 0 : index
    %c0_4 = arith.constant 0 : index
    %1 = vector.load %arg2[%c0_2, %c0_3, %c0_4] : memref<2x8x128xf32, #tpu.memory_space<vmem>>, vector<2x8x128xf32>
    %cst = arith.constant dense<0.000000e+00> : vector<2x8xf32>
    %2 = vector.multi_reduction <add>, %0, %cst [2] : vector<2x8x128xf32> to vector<2x8xf32>
    %3 = vector.shape_cast %2 : vector<2x8xf32> to vector<2x8x1xf32>
    %cst_5 = arith.constant dense<0.000000e+00> : vector<8x1xf32>
    %4 = vector.multi_reduction <add>, %3, %cst_5 [0] : vector<2x8x1xf32> to vector<8x1xf32>
    %5 = vector.shape_cast %4 : vector<8x1xf32> to vector<1x8x1xf32>
    %cst_6 = arith.constant 3.906250e-03 : f32
    %6 = vector.broadcast %cst_6 : f32 to vector<1x8x1xf32>
    %7 = arith.mulf %5, %6 : vector<1x8x1xf32>
    %cst_7 = arith.constant dense<0.000000e+00> : vector<2x8xf32>
    %8 = vector.multi_reduction <add>, %1, %cst_7 [2] : vector<2x8x128xf32> to vector<2x8xf32>
    %9 = vector.shape_cast %8 : vector<2x8xf32> to vector<2x8x1xf32>
    %cst_8 = arith.constant dense<0.000000e+00> : vector<8x1xf32>
    %10 = vector.multi_reduction <add>, %9, %cst_8 [0] : vector<2x8x1xf32> to vector<8x1xf32>
    %11 = vector.shape_cast %10 : vector<8x1xf32> to vector<1x8x1xf32>
    %cst_9 = arith.constant 3.906250e-03 : f32
    %12 = vector.broadcast %cst_9 : f32 to vector<1x8x1xf32>
    %13 = arith.mulf %11, %12 : vector<1x8x1xf32>
    %14 = arith.mulf %0, %0 : vector<2x8x128xf32>
    %cst_10 = arith.constant dense<0.000000e+00> : vector<2x8xf32>
    %15 = vector.multi_reduction <add>, %14, %cst_10 [2] : vector<2x8x128xf32> to vector<2x8xf32>
    %16 = vector.shape_cast %15 : vector<2x8xf32> to vector<2x8x1xf32>
    %cst_11 = arith.constant dense<0.000000e+00> : vector<8x1xf32>
    %17 = vector.multi_reduction <add>, %16, %cst_11 [0] : vector<2x8x1xf32> to vector<8x1xf32>
    %18 = vector.shape_cast %17 : vector<8x1xf32> to vector<1x8x1xf32>
    %cst_12 = arith.constant 3.906250e-03 : f32
    %19 = vector.broadcast %cst_12 : f32 to vector<1x8x1xf32>
    %20 = arith.mulf %18, %19 : vector<1x8x1xf32>
    %21 = arith.mulf %7, %7 : vector<1x8x1xf32>
    %22 = arith.subf %20, %21 : vector<1x8x1xf32>
    %cst_13 = arith.constant 9.99999974E-6 : f32
    %23 = vector.broadcast %cst_13 : f32 to vector<1x8x1xf32>
    %24 = arith.addf %22, %23 : vector<1x8x1xf32>
    %25 = arith.mulf %1, %1 : vector<2x8x128xf32>
    %cst_14 = arith.constant dense<0.000000e+00> : vector<2x8xf32>
    %26 = vector.multi_reduction <add>, %25, %cst_14 [2] : vector<2x8x128xf32> to vector<2x8xf32>
    %27 = vector.shape_cast %26 : vector<2x8xf32> to vector<2x8x1xf32>
    %cst_15 = arith.constant dense<0.000000e+00> : vector<8x1xf32>
    %28 = vector.multi_reduction <add>, %27, %cst_15 [0] : vector<2x8x1xf32> to vector<8x1xf32>
    %29 = vector.shape_cast %28 : vector<8x1xf32> to vector<1x8x1xf32>
    %cst_16 = arith.constant 3.906250e-03 : f32
    %30 = vector.broadcast %cst_16 : f32 to vector<1x8x1xf32>
    %31 = arith.mulf %29, %30 : vector<1x8x1xf32>
    %32 = arith.mulf %13, %13 : vector<1x8x1xf32>
    %33 = arith.subf %31, %32 : vector<1x8x1xf32>
    %cst_17 = arith.constant 9.99999974E-6 : f32
    %34 = vector.broadcast %cst_17 : f32 to vector<1x8x1xf32>
    %35 = arith.addf %33, %34 : vector<1x8x1xf32>
    %36 = arith.mulf %0, %1 : vector<2x8x128xf32>
    %cst_18 = arith.constant dense<0.000000e+00> : vector<2x8xf32>
    %37 = vector.multi_reduction <add>, %36, %cst_18 [2] : vector<2x8x128xf32> to vector<2x8xf32>
    %38 = vector.shape_cast %37 : vector<2x8xf32> to vector<2x8x1xf32>
    %cst_19 = arith.constant dense<0.000000e+00> : vector<8x1xf32>
    %39 = vector.multi_reduction <add>, %38, %cst_19 [0] : vector<2x8x1xf32> to vector<8x1xf32>
    %40 = vector.shape_cast %39 : vector<8x1xf32> to vector<1x8x1xf32>
    %cst_20 = arith.constant 3.906250e-03 : f32
    %41 = vector.broadcast %cst_20 : f32 to vector<1x8x1xf32>
    %42 = arith.mulf %40, %41 : vector<1x8x1xf32>
    %43 = arith.mulf %7, %13 : vector<1x8x1xf32>
    %44 = arith.subf %42, %43 : vector<1x8x1xf32>
    %45 = arith.mulf %24, %35 : vector<1x8x1xf32>
    %46 = arith.mulf %44, %44 : vector<1x8x1xf32>
    %47 = arith.subf %45, %46 : vector<1x8x1xf32>
    %48 = math.sqrt %47 : vector<1x8x1xf32>
    %49 = arith.addf %24, %35 : vector<1x8x1xf32>
    %cst_21 = arith.constant 2.000000e+00 : f32
    %50 = vector.broadcast %cst_21 : f32 to vector<1x8x1xf32>
    %51 = arith.mulf %50, %48 : vector<1x8x1xf32>
    %52 = arith.addf %49, %51 : vector<1x8x1xf32>
    %53 = math.sqrt %52 : vector<1x8x1xf32>
    %54 = arith.mulf %48, %53 : vector<1x8x1xf32>
    %cst_22 = arith.constant 1.000000e+00 : f32
    %55 = vector.broadcast %cst_22 : f32 to vector<1x8x1xf32>
    %56 = arith.divf %55, %54 : vector<1x8x1xf32>
    %57 = arith.addf %35, %48 : vector<1x8x1xf32>
    %58 = arith.mulf %57, %56 : vector<1x8x1xf32>
    %59 = arith.addf %24, %48 : vector<1x8x1xf32>
    %60 = arith.mulf %59, %56 : vector<1x8x1xf32>
    %cst_23 = arith.constant 0.000000e+00 : f32
    %61 = vector.broadcast %cst_23 : f32 to vector<1x8x1xf32>
    %62 = arith.subf %61, %44 : vector<1x8x1xf32>
    %63 = arith.mulf %62, %56 : vector<1x8x1xf32>
    %c0_24 = arith.constant 0 : index
    %c0_25 = arith.constant 0 : index
    %64 = vector.load %arg3[%c0_24, %c0_25] : memref<8x8xf32, #tpu.memory_space<vmem>>, vector<8x1xf32>
    %65 = vector.shape_cast %64 : vector<8x1xf32> to vector<1x8x1xf32>
    %c0_26 = arith.constant 0 : index
    %c1 = arith.constant 1 : index
    %66 = vector.load %arg3[%c0_26, %c1] : memref<8x8xf32, #tpu.memory_space<vmem>>, vector<8x1xf32>
    %67 = vector.shape_cast %66 : vector<8x1xf32> to vector<1x8x1xf32>
    %c0_27 = arith.constant 0 : index
    %c2 = arith.constant 2 : index
    %68 = vector.load %arg3[%c0_27, %c2] : memref<8x8xf32, #tpu.memory_space<vmem>>, vector<8x1xf32>
    %69 = vector.shape_cast %68 : vector<8x1xf32> to vector<1x8x1xf32>
    %c0_28 = arith.constant 0 : index
    %c3 = arith.constant 3 : index
    %70 = vector.load %arg3[%c0_28, %c3] : memref<8x8xf32, #tpu.memory_space<vmem>>, vector<8x1xf32>
    %71 = vector.shape_cast %70 : vector<8x1xf32> to vector<1x8x1xf32>
    %c0_29 = arith.constant 0 : index
    %c4 = arith.constant 4 : index
    %72 = vector.load %arg3[%c0_29, %c4] : memref<8x8xf32, #tpu.memory_space<vmem>>, vector<8x1xf32>
    %73 = vector.shape_cast %72 : vector<8x1xf32> to vector<1x8x1xf32>
    %74 = arith.mulf %65, %58 : vector<1x8x1xf32>
    %75 = arith.mulf %69, %63 : vector<1x8x1xf32>
    %76 = arith.addf %74, %75 : vector<1x8x1xf32>
    %77 = arith.mulf %65, %63 : vector<1x8x1xf32>
    %78 = arith.mulf %69, %60 : vector<1x8x1xf32>
    %79 = arith.addf %77, %78 : vector<1x8x1xf32>
    %80 = arith.mulf %69, %58 : vector<1x8x1xf32>
    %81 = arith.mulf %67, %63 : vector<1x8x1xf32>
    %82 = arith.addf %80, %81 : vector<1x8x1xf32>
    %83 = arith.mulf %69, %63 : vector<1x8x1xf32>
    %84 = arith.mulf %67, %60 : vector<1x8x1xf32>
    %85 = arith.addf %83, %84 : vector<1x8x1xf32>
    %86 = arith.mulf %76, %7 : vector<1x8x1xf32>
    %87 = arith.mulf %79, %13 : vector<1x8x1xf32>
    %88 = arith.addf %86, %87 : vector<1x8x1xf32>
    %89 = arith.subf %71, %88 : vector<1x8x1xf32>
    %90 = arith.mulf %82, %7 : vector<1x8x1xf32>
    %91 = arith.mulf %85, %13 : vector<1x8x1xf32>
    %92 = arith.addf %90, %91 : vector<1x8x1xf32>
    %93 = arith.subf %73, %92 : vector<1x8x1xf32>
    %94 = vector.broadcast %76 : vector<1x8x1xf32> to vector<2x8x128xf32>
    %95 = arith.mulf %94, %0 : vector<2x8x128xf32>
    %96 = vector.broadcast %79 : vector<1x8x1xf32> to vector<2x8x128xf32>
    %97 = arith.mulf %96, %1 : vector<2x8x128xf32>
    %98 = arith.addf %95, %97 : vector<2x8x128xf32>
    %99 = vector.broadcast %89 : vector<1x8x1xf32> to vector<2x8x128xf32>
    %100 = arith.addf %98, %99 : vector<2x8x128xf32>
    %c0_30 = arith.constant 0 : index
    %c0_31 = arith.constant 0 : index
    %c0_32 = arith.constant 0 : index
    %101 = vector.load %arg4[%c0_30, %c0_31, %c0_32] : memref<2x8x128xf32, #tpu.memory_space<vmem>>, vector<2x8x128xf32>
    tpu.vector_store %arg4[%c0_30, %c0_31, %c0_32], %100 {strides = array<i32>} : memref<2x8x128xf32, #tpu.memory_space<vmem>>, vector<2x8x128xf32>,
    %102 = vector.broadcast %82 : vector<1x8x1xf32> to vector<2x8x128xf32>
    %103 = arith.mulf %102, %0 : vector<2x8x128xf32>
    %104 = vector.broadcast %85 : vector<1x8x1xf32> to vector<2x8x128xf32>
    %105 = arith.mulf %104, %1 : vector<2x8x128xf32>
    %106 = arith.addf %103, %105 : vector<2x8x128xf32>
    %107 = vector.broadcast %93 : vector<1x8x1xf32> to vector<2x8x128xf32>
    %108 = arith.addf %106, %107 : vector<2x8x128xf32>
    %c0_33 = arith.constant 0 : index
    %c0_34 = arith.constant 0 : index
    %c0_35 = arith.constant 0 : index
    %109 = vector.load %arg5[%c0_33, %c0_34, %c0_35] : memref<2x8x128xf32, #tpu.memory_space<vmem>>, vector<2x8x128xf32>
    tpu.vector_store %arg5[%c0_33, %c0_34, %c0_35], %108 {strides = array<i32>} : memref<2x8x128xf32, #tpu.memory_space<vmem>>, vector<2x8x128xf32>,
    %110 = tpu.iota {dimensions = array<i32: 1>} : vector<8x8xi32>
    %c0_i32 = arith.constant 0 : i32
    %111 = vector.broadcast %c0_i32 : i32 to vector<8x8xi32>
    %112 = arith.cmpi eq, %110, %111 : vector<8x8xi32>
    %113 = vector.shape_cast %7 : vector<1x8x1xf32> to vector<8x1xf32>
    %cst_36 = arith.constant 0.000000e+00 : f32
    %114 = vector.shape_cast %113 : vector<8x1xf32> to vector<8x1xf32>
    %115 = vector.broadcast %114 : vector<8x1xf32> to vector<8x8xf32>
    %116 = vector.broadcast %cst_36 : f32 to vector<8x8xf32>
    %117 = arith.select %112, %115, %116 : vector<8x8xi1>, vector<8x8xf32>
    %c1_i32 = arith.constant 1 : i32
    %118 = vector.broadcast %c1_i32 : i32 to vector<8x8xi32>
    %119 = arith.cmpi eq, %110, %118 : vector<8x8xi32>
    %120 = vector.shape_cast %13 : vector<1x8x1xf32> to vector<8x1xf32>
    %121 = vector.shape_cast %120 : vector<8x1xf32> to vector<8x1xf32>
    %122 = vector.broadcast %121 : vector<8x1xf32> to vector<8x8xf32>
    %123 = arith.select %119, %122, %117 : vector<8x8xi1>, vector<8x8xf32>
    %c2_i32 = arith.constant 2 : i32
    %124 = vector.broadcast %c2_i32 : i32 to vector<8x8xi32>
    %125 = arith.cmpi eq, %110, %124 : vector<8x8xi32>
    %126 = vector.shape_cast %24 : vector<1x8x1xf32> to vector<8x1xf32>
    %127 = vector.shape_cast %126 : vector<8x1xf32> to vector<8x1xf32>
    %128 = vector.broadcast %127 : vector<8x1xf32> to vector<8x8xf32>
    %129 = arith.select %125, %128, %123 : vector<8x8xi1>, vector<8x8xf32>
    %c3_i32 = arith.constant 3 : i32
    %130 = vector.broadcast %c3_i32 : i32 to vector<8x8xi32>
    %131 = arith.cmpi eq, %110, %130 : vector<8x8xi32>
    %132 = vector.shape_cast %35 : vector<1x8x1xf32> to vector<8x1xf32>
    %133 = vector.shape_cast %132 : vector<8x1xf32> to vector<8x1xf32>
    %134 = vector.broadcast %133 : vector<8x1xf32> to vector<8x8xf32>
    %135 = arith.select %131, %134, %129 : vector<8x8xi1>, vector<8x8xf32>
    %c4_i32 = arith.constant 4 : i32
    %136 = vector.broadcast %c4_i32 : i32 to vector<8x8xi32>
    %137 = arith.cmpi eq, %110, %136 : vector<8x8xi32>
    %138 = vector.shape_cast %44 : vector<1x8x1xf32> to vector<8x1xf32>
    %139 = vector.shape_cast %138 : vector<8x1xf32> to vector<8x1xf32>
    %140 = vector.broadcast %139 : vector<8x1xf32> to vector<8x8xf32>
    %141 = arith.select %137, %140, %135 : vector<8x8xi1>, vector<8x8xf32>
    %c0_37 = arith.constant 0 : index
    %c0_38 = arith.constant 0 : index
    %142 = vector.load %arg6[%c0_37, %c0_38] : memref<8x8xf32, #tpu.memory_space<vmem>>, vector<8x8xf32>
    tpu.vector_store %arg6[%c0_37, %c0_38], %141 {strides = array<i32>} : memref<8x8xf32, #tpu.memory_space<vmem>>, vector<8x8xf32>,
    return
  }
  func.func @transform_0(%arg0: i32) -> (i32, i32, i32) {
    %c0_i32 = arith.constant 0 : i32
    %c0_i32_0 = arith.constant 0 : i32
    %c0_i32_1 = arith.constant 0 : i32
    return %c0_i32, %arg0, %c0_i32_0 : i32, i32, i32
  }
  func.func @transform_1(%arg0: i32) -> (i32, i32, i32) {
    %c0_i32 = arith.constant 0 : i32
    %c0_i32_0 = arith.constant 0 : i32
    %c0_i32_1 = arith.constant 0 : i32
    return %c0_i32, %arg0, %c0_i32_0 : i32, i32, i32
  }
  func.func @transform_2(%arg0: i32) -> (i32, i32) {
    %c0_i32 = arith.constant 0 : i32
    %c0_i32_0 = arith.constant 0 : i32
    return %arg0, %c0_i32 : i32, i32
  }
  func.func @transform_3(%arg0: i32) -> (i32, i32, i32) {
    %c0_i32 = arith.constant 0 : i32
    %c0_i32_0 = arith.constant 0 : i32
    %c0_i32_1 = arith.constant 0 : i32
    return %c0_i32, %arg0, %c0_i32_0 : i32, i32, i32
  }
  func.func @transform_4(%arg0: i32) -> (i32, i32, i32) {
    %c0_i32 = arith.constant 0 : i32
    %c0_i32_0 = arith.constant 0 : i32
    %c0_i32_1 = arith.constant 0 : i32
    return %c0_i32, %arg0, %c0_i32_0 : i32, i32, i32
  }
  func.func @transform_5(%arg0: i32) -> (i32, i32) {
    %c0_i32 = arith.constant 0 : i32
    %c0_i32_0 = arith.constant 0 : i32
    return %arg0, %c0_i32 : i32, i32
  }
}

</mosaic_0001>

<llo_original>
// kernel: custom-call.3
$region0: #{custom-call.3}
  %s0 = inlined_call_operand.hbm [shape: c64[16], index: 0, kind: input, shape index: {}]
  %s1 = inlined_call_operand.vmem [shape: f32[16], index: 1, kind: output, shape index: {}]
  %s2 = scalar_lea.hbm %s0, 16
  $region1: #{custom-call.3} parent=0
    #allocation0 [shape = 's32[1]{0}', space=sflag, size = 0x4, scoped, tag = 'scoped memory for custom-call.3']
    %3 = vsyncpa [#allocation0], 0
    %s4 = sshll.u32 %s1, 4
    %s5 = int_to_ptr.vmem [resolvable:$true] %s4
    %7 = dma.hbm_to_vmem [thread:$0]  %s2, 16, %s5, [#allocation0]
    %8 = dma.done [#allocation0], 16
    %9 = vsyncpa [#allocation0], 1

// kernel: custom-call.2
$region0: #{custom-call.2}
  %s0 = inlined_call_operand.hbm [shape: c64[16], index: 0, kind: input, shape index: {}]
  %s1 = inlined_call_operand.vmem [shape: f32[16], index: 1, kind: output, shape index: {}]
  $region1: #{custom-call.2} parent=0
    #allocation0 [shape = 's32[1]{0}', space=sflag, size = 0x4, scoped, tag = 'scoped memory for custom-call.2']
    %2 = vsyncpa [#allocation0], 0
    %s3 = sshll.u32 %s1, 4
    %s4 = int_to_ptr.vmem [resolvable:$true] %s3
    %6 = dma.hbm_to_vmem [thread:$0]  %s0, 16, %s4, [#allocation0]
    %7 = dma.done [#allocation0], 16
    %8 = vsyncpa [#allocation0], 1

// kernel: custom-call
$region0: #{custom-call}
  %s0 = inlined_call_operand.hbm [shape: c64[2,16,128], index: 0, kind: input, shape index: {}]
  %s1 = inlined_call_operand.vmem [shape: f32[2,16,128], index: 1, kind: output, shape index: {}]
  $region1: #{custom-call} parent=0
    #allocation0 [shape = 's32[1]{0}', space=sflag, size = 0x4, scoped, tag = 'scoped memory for custom-call']
    %2 = vsyncpa [#allocation0], 0
    %s3 = sshll.u32 %s1, 4
    %s4 = int_to_ptr.vmem [resolvable:$true] %s3
    %6 = dma.hbm_to_vmem [thread:$0]  %s0, 512, %s4, [#allocation0]
    %7 = dma.done [#allocation0], 512
    %8 = vsyncpa [#allocation0], 1

// kernel: custom-call.1
$region0: #{custom-call.1}
  %s0 = inlined_call_operand.hbm [shape: c64[2,16,128], index: 0, kind: input, shape index: {}]
  %s1 = inlined_call_operand.vmem [shape: f32[2,16,128], index: 1, kind: output, shape index: {}]
  %s2 = scalar_lea.hbm %s0, 512
  $region1: #{custom-call.1} parent=0
    #allocation0 [shape = 's32[1]{0}', space=sflag, size = 0x4, scoped, tag = 'scoped memory for custom-call.1']
    %3 = vsyncpa [#allocation0], 0
    %s4 = sshll.u32 %s1, 4
    %s5 = int_to_ptr.vmem [resolvable:$true] %s4
    %7 = dma.hbm_to_vmem [thread:$0]  %s2, 512, %s5, [#allocation0]
    %8 = dma.done [#allocation0], 512
    %9 = vsyncpa [#allocation0], 1

// kernel: custom-call.7
$region0: #{custom-call.7}
  %s0 = inlined_call_operand.vmem [shape: f32[16], index: 0, kind: input, shape index: {}]
  %s1 = inlined_call_operand.vmem [shape: f32[16], index: 1, kind: input, shape index: {}]
  %s2 = inlined_call_operand.hbm [shape: c64[16], index: 2, kind: output, shape index: {}]
  %s3 = scalar_lea.hbm %s2, 16
  $region1: #{custom-call.7} parent=0
    #allocation0 [shape = 's32[1]{0}', space=sflag, size = 0x4, scoped, tag = 'scoped memory for custom-call.7']
    %4 = vsyncpa [#allocation0], 0
    %s5 = sshll.u32 %s0, 4
    %s6 = int_to_ptr.vmem [resolvable:$true] %s5
    %8 = dma.vmem_to_hbm [thread:$0]  %s6, 16, %s2, [#allocation0]
    %9 = dma.done [#allocation0], 16
    %10 = vsyncpa [#allocation0], 1
  $region2: #{custom-call.7} parent=0
    #allocation1 [shape = 's32[1]{0}', space=sflag, size = 0x4, scoped, tag = 'scoped memory for custom-call.7']
    %11 = vsyncpa [#allocation1], 0
    %s12 = sshll.u32 %s1, 4
    %s13 = int_to_ptr.vmem [resolvable:$true] %s12
    %15 = dma.vmem_to_hbm [thread:$0]  %s13, 16, %s3, [#allocation1]
    %16 = dma.done [#allocation1], 16
    %17 = vsyncpa [#allocation1], 1

// kernel: custom-call.6
$region0: #{custom-call.6}
  %s0 = inlined_call_operand.vmem [shape: f32[2,16,128], index: 0, kind: input, shape index: {}]
  %s1 = inlined_call_operand.vmem [shape: f32[2,16,128], index: 1, kind: input, shape index: {}]
  %s2 = inlined_call_operand.hbm [shape: c64[2,16,128], index: 2, kind: output, shape index: {}]
  %s3 = scalar_lea.hbm %s2, 512
  $region1: #{custom-call.6} parent=0
    #allocation0 [shape = 's32[1]{0}', space=sflag, size = 0x4, scoped, tag = 'scoped memory for custom-call.6']
    %4 = vsyncpa [#allocation0], 0
    %s5 = sshll.u32 %s0, 4
    %s6 = int_to_ptr.vmem [resolvable:$true] %s5
    %8 = dma.vmem_to_hbm [thread:$0]  %s6, 512, %s2, [#allocation0]
    %9 = dma.done [#allocation0], 512
    %10 = vsyncpa [#allocation0], 1
  $region2: #{custom-call.6} parent=0
    #allocation1 [shape = 's32[1]{0}', space=sflag, size = 0x4, scoped, tag = 'scoped memory for custom-call.6']
    %11 = vsyncpa [#allocation1], 0
    %s12 = sshll.u32 %s1, 4
    %s13 = int_to_ptr.vmem [resolvable:$true] %s12
    %15 = dma.vmem_to_hbm [thread:$0]  %s13, 512, %s3, [#allocation1]
    %16 = dma.done [#allocation1], 512
    %17 = vsyncpa [#allocation1], 1

// kernel: complex_batchnorm1d.1
$region0: #{complex_batchnorm1d.1}
  #allocation0 [shape = 'u32[]', space=smem, size = 0x4, offset = 0x4, fixed_abs, tag = 'smem constant byte address 0x4 - core index']
  #allocation1 [shape = 'u32[144,128]{1,0:T(1,128)}', space=vmem, size = 0x12000, scoped, tag = 'internal scratch']
  %s0 = inlined_call_operand.vmem [shape: f32[2,16,128], index: 0, kind: input, shape index: {}]
  %s1 = inlined_call_operand.vmem [shape: f32[2,16,128], index: 1, kind: input, shape index: {}]
  %s2 = inlined_call_operand.vmem [shape: f32[16,8], index: 2, kind: input, shape index: {}]
  %s3 = inlined_call_operand.vmem [shape: f32[2,16,128], index: 3, kind: output, shape index: {0}]
  %s4 = inlined_call_operand.vmem [shape: f32[2,16,128], index: 4, kind: output, shape index: {1}]
  %s5 = inlined_call_operand.vmem [shape: f32[16,8], index: 5, kind: output, shape index: {2}]
  %6 = xla_tuple %s3, %s4, %s5
  %s7 = sld [smem:[#allocation0]]
  $region205: #{complex_batchnorm1d.1} parent=0
    _
  %s9 = ssub.s32 1, %s7
  %s10 = scalar_select 0, %s9, %s7
  $region1: #{complex_batchnorm1d.1} parent=0
    #allocation2 [shape = 'u8[16384]{0}', space=vmem, size = 0x4000, scoped, tag = 'input window, operand 0']
    #allocation3 [shape = 'u8[16384]{0}', space=vmem, size = 0x4000, scoped, tag = 'input window, operand 1']
    #allocation4 [shape = 'u8[16384]{0}', space=vmem, size = 0x4000, scoped, tag = 'output window, operand 0']
    #allocation5 [shape = 'u8[16384]{0}', space=vmem, size = 0x4000, scoped, tag = 'output window, operand 1']
    loop: start=0, step=1, limit=4
    $region2: #{complex_batchnorm1d.1} parent=1 // loop_pre_header
      _
    $region3: #{complex_batchnorm1d.1} parent=1 // loop_header
      %s12 = sphi 0, %s16
      %p13 = scmp.ge.s32.totalorder %s12, 4
      %s22 = sphi 0, %s24
      %s25 = sphi 0, %s22
      %s26 = sphi 0, %s25
      %s42 = sphi 0, %s26
      %s48 = sphi 0, %s50
      %s51 = sphi 0, %s48
      %s52 = sphi 0, %s51
      %s68 = sphi 0, %s52
      %s74 = sphi 0, %s76
      %s77 = sphi 0, %s74
      %s78 = sphi 0, %s77
      %s94 = sphi 0, %s78
      %s100 = sphi 0, %s102
      %s103 = sphi 0, %s100
      %s104 = sphi 0, %s103
      %s120 = sphi 0, %s104
      %s126 = sphi 0, %s128
      %s129 = sphi 0, %s126
      %s130 = sphi 0, %s129
      %s146 = sphi 0, %s130
      %s152 = sphi 0, %s154
      %s155 = sphi 0, %s152
      %s156 = sphi 0, %s155
      %s172 = sphi 0, %s156
    $region4: #{complex_batchnorm1d.1} parent=1 // loop_header_branch
      %15 = sbr.rel (%p13) target = $region8
    $region5: #{complex_batchnorm1d.1} parent=1 // loop_body
      %s17 = ssub.s32 %s12, 1
      %s18 = ssub.s32 %s12, 2
      %s19 = sadd.s32 %s12, 1
      %s20 = ssub.s32 %s12, %s19
      %p21 = scmp.eq.s32.totalorder %s20, 0
      %s23 = sadd.s32 %s22, 1
      %s24 = scalar_select %p21, %s22, %s23
      %p27 = pneg %p21
      %p28 = scmp.eq.s32.totalorder %s12, 1
      %p29 = por %p27, %p28
      %p30 = scmp.ne.s32.totalorder %s22, %s25
      %p31 = scmp.eq.s32.totalorder %s12, 0
      %p32 = por %p30, %p31
      %p33 = scmp.ne.s32.totalorder %s22, %s25
      %p34 = scmp.eq.s32.totalorder %s17, 1
      %p35 = por %p33, %p34
      %p36 = scmp.ne.s32.totalorder %s25, %s26
      %p37 = scmp.eq.s32.totalorder %s17, 0
      %p38 = por %p36, %p37
      %p39 = scmp.ne.s32.totalorder %s25, %s26
      %p40 = scmp.eq.s32.totalorder %s18, 1
      %p41 = por %p39, %p40
      %p43 = scmp.ne.s32.totalorder %s26, %s42
      %p44 = scmp.eq.s32.totalorder %s18, 0
      %p45 = por %p43, %p44
      %s46 = ssub.s32 %s12, %s19
      %p47 = scmp.eq.s32.totalorder %s46, 0
      %s49 = sadd.s32 %s48, 1
      %s50 = scalar_select %p47, %s48, %s49
      %p53 = pneg %p47
      %p54 = scmp.eq.s32.totalorder %s12, 1
      %p55 = por %p53, %p54
      %p56 = scmp.ne.s32.totalorder %s48, %s51
      %p57 = scmp.eq.s32.totalorder %s12, 0
      %p58 = por %p56, %p57
      %p59 = scmp.ne.s32.totalorder %s48, %s51
      %p60 = scmp.eq.s32.totalorder %s17, 1
      %p61 = por %p59, %p60
      %p62 = scmp.ne.s32.totalorder %s51, %s52
      %p63 = scmp.eq.s32.totalorder %s17, 0
      %p64 = por %p62, %p63
      %p65 = scmp.ne.s32.totalorder %s51, %s52
      %p66 = scmp.eq.s32.totalorder %s18, 1
      %p67 = por %p65, %p66
      %p69 = scmp.ne.s32.totalorder %s52, %s68
      %p70 = scmp.eq.s32.totalorder %s18, 0
      %p71 = por %p69, %p70
      %s72 = ssub.s32 %s12, %s19
      %p73 = scmp.eq.s32.totalorder %s72, 0
      %s75 = sadd.s32 %s74, 1
      %s76 = scalar_select %p73, %s74, %s75
      %p79 = pneg %p73
      %p80 = scmp.eq.s32.totalorder %s12, 1
      %p81 = por %p79, %p80
      %p82 = scmp.ne.s32.totalorder %s74, %s77
      %p83 = scmp.eq.s32.totalorder %s12, 0
      %p84 = por %p82, %p83
      %p85 = scmp.ne.s32.totalorder %s74, %s77
      %p86 = scmp.eq.s32.totalorder %s17, 1
      %p87 = por %p85, %p86
      %p88 = scmp.ne.s32.totalorder %s77, %s78
      %p89 = scmp.eq.s32.totalorder %s17, 0
      %p90 = por %p88, %p89
      %p91 = scmp.ne.s32.totalorder %s77, %s78
      %p92 = scmp.eq.s32.totalorder %s18, 1
      %p93 = por %p91, %p92
      %p95 = scmp.ne.s32.totalorder %s78, %s94
      %p96 = scmp.eq.s32.totalorder %s18, 0
      %p97 = por %p95, %p96
      %s98 = ssub.s32 %s12, %s19
      %p99 = scmp.eq.s32.totalorder %s98, 0
      %s101 = sadd.s32 %s100, 1
      %s102 = scalar_select %p99, %s100, %s101
      %p105 = pneg %p99
      %p106 = scmp.eq.s32.totalorder %s12, 1
      %p107 = por %p105, %p106
      %p108 = scmp.ne.s32.totalorder %s100, %s103
      %p109 = scmp.eq.s32.totalorder %s12, 0
      %p110 = por %p108, %p109
      %p111 = scmp.ne.s32.totalorder %s100, %s103
      %p112 = scmp.eq.s32.totalorder %s17, 1
      %p113 = por %p111, %p112
      %p114 = scmp.ne.s32.totalorder %s103, %s104
      %p115 = scmp.eq.s32.totalorder %s17, 0
      %p116 = por %p114, %p115
      %p117 = scmp.ne.s32.totalorder %s103, %s104
      %p118 = scmp.eq.s32.totalorder %s18, 1
      %p119 = por %p117, %p118
      %p121 = scmp.ne.s32.totalorder %s104, %s120
      %p122 = scmp.eq.s32.totalorder %s18, 0
      %p123 = por %p121, %p122
      %s124 = ssub.s32 %s12, %s19
      %p125 = scmp.eq.s32.totalorder %s124, 0
      %s127 = sadd.s32 %s126, 1
      %s128 = scalar_select %p125, %s126, %s127
      %p131 = pneg %p125
      %p132 = scmp.eq.s32.totalorder %s12, 1
      %p133 = por %p131, %p132
      %p134 = scmp.ne.s32.totalorder %s126, %s129
      %p135 = scmp.eq.s32.totalorder %s12, 0
      %p136 = por %p134, %p135
      %p137 = scmp.ne.s32.totalorder %s126, %s129
      %p138 = scmp.eq.s32.totalorder %s17, 1
      %p139 = por %p137, %p138
      %p140 = scmp.ne.s32.totalorder %s129, %s130
      %p141 = scmp.eq.s32.totalorder %s17, 0
      %p142 = por %p140, %p141
      %p143 = scmp.ne.s32.totalorder %s129, %s130
      %p144 = scmp.eq.s32.totalorder %s18, 1
      %p145 = por %p143, %p144
      %p147 = scmp.ne.s32.totalorder %s130, %s146
      %p148 = scmp.eq.s32.totalorder %s18, 0
      %p149 = por %p147, %p148
      %s150 = ssub.s32 %s12, %s19
      %p151 = scmp.eq.s32.totalorder %s150, 0
      %s153 = sadd.s32 %s152, 1
      %s154 = scalar_select %p151, %s152, %s153
      %p157 = pneg %p151
      %p158 = scmp.eq.s32.totalorder %s12, 1
      %p159 = por %p157, %p158
      %p160 = scmp.ne.s32.totalorder %s152, %s155
      %p161 = scmp.eq.s32.totalorder %s12, 0
      %p162 = por %p160, %p161
      %p163 = scmp.ne.s32.totalorder %s152, %s155
      %p164 = scmp.eq.s32.totalorder %s17, 1
      %p165 = por %p163, %p164
      %p166 = scmp.ne.s32.totalorder %s155, %s156
      %p167 = scmp.eq.s32.totalorder %s17, 0
      %p168 = por %p166, %p167
      %p169 = scmp.ne.s32.totalorder %s155, %s156
      %p170 = scmp.eq.s32.totalorder %s18, 1
      %p171 = por %p169, %p170
      %p173 = scmp.ne.s32.totalorder %s156, %s172
      %p174 = scmp.eq.s32.totalorder %s18, 0
      %p175 = por %p173, %p174
      %p176 = scmp.le.s32.totalorder 1, %s12
      %p177 = scmp.lt.s32.totalorder %s12, 3
      %p178 = pnand %p176, %p177
      %p179 = pneg %p178
      // Predicated region
      $region9: #{complex_batchnorm1d.1} parent=5 // pred_check
        _
      $region10: #{complex_batchnorm1d.1} parent=5 // pred_check_branch
        %181 = sbr.rel (%p178) target = $region12
      $region11: #{complex_batchnorm1d.1} parent=5 // pred_region
        %s182 = ssub.s32 %s12, 1
      $region12: #{complex_batchnorm1d.1} parent=5 // pred_fallthru
        _
      %p183 = scmp.lt.s32.totalorder %s12, 2
      // Predicated region
      $region13: #{complex_batchnorm1d.1} parent=5 // pred_check
        %p184 = pneg %p183
      $region14: #{complex_batchnorm1d.1} parent=5 // pred_check_branch
        %186 = sbr.rel (%p184) target = $region16
      $region15: #{complex_batchnorm1d.1} parent=5 // pred_region
        // Predicated region
        $region17: #{complex_batchnorm1d.1} parent=15 // pred_check
          %p187 = pneg %p32
        $region18: #{complex_batchnorm1d.1} parent=15 // pred_check_branch
          %189 = sbr.rel (%p187) target = $region20
        $region19: #{complex_batchnorm1d.1} parent=15 // pred_region
          %s190 = sand.u32 %s22, 1
          %s191 = sand.u32 %s22, 1
          %s192 = smul.addr %s191, 16
          %s193 = scalar_lea.vmem [#allocation2], %s192
          %s194 = smul.addr %s12, 8
          %s195 = scalar_lea.vmem %s0, %s194
          // Predicated region
          $region21: #{complex_batchnorm1d.1} parent=19 // pred_check
            _
          $region22: #{complex_batchnorm1d.1} parent=19 // pred_check_branch
            %197 = sbr.rel (0) target = $region24
          $region23: #{complex_batchnorm1d.1} parent=19 // pred_region
            // Predicated region
            $region25: #{complex_batchnorm1d.1} parent=23 // pred_check
              _
            $region26: #{complex_batchnorm1d.1} parent=23 // pred_check_branch
              %199 = sbr.rel (0) target = $region28
            $region27: #{complex_batchnorm1d.1} parent=23 // pred_region
              // Predicated region
              $region40: #{complex_batchnorm1d.1} parent=27 // pred_check
                _
              $region41: #{complex_batchnorm1d.1} parent=27 // pred_check_branch
                %217 = sbr.rel (0) target = $region43
              $region42: #{complex_batchnorm1d.1} parent=27 // pred_region
                loop: start=0, step=1, limit=1
                $region44: #{complex_batchnorm1d.1} parent=42 // loop_pre_header
                  _
                $region45: #{complex_batchnorm1d.1} parent=42 // loop_header
                  %s219 = sphi 0, %s223
                  %p220 = scmp.ge.s32.totalorder %s219, 1
                  %s224 = sphi %s195, %s195
                  %s225 = sphi %s193, %s193
                $region46: #{complex_batchnorm1d.1} parent=42 // loop_header_branch
                  %222 = sbr.rel (%p220) target = $region50
                $region47: #{complex_batchnorm1d.1} parent=42 // loop_body
                  %v226 = vld [vmem:[%s224] sm:$0xff]
                  %227 = vst [vmem:[%s225] sm:$0xff] %v226
                  %v228 = vld [vmem:[%s224 + $0x10] sm:$0xff]
                  %229 = vst [vmem:[%s225 + $0x8] sm:$0xff] %v228
                $region48: #{complex_batchnorm1d.1} parent=42 // loop_footer
                  %s223 = sadd.s32 1, %s219
                $region49: #{complex_batchnorm1d.1} parent=42 // loop_footer_branch
                  %218 = sbr.rel target = $region45
                $region50: #{complex_batchnorm1d.1} parent=42 // loop_exit
                  _
              $region43: #{complex_batchnorm1d.1} parent=27 // pred_fallthru
                _
              // Predicated region
              $region51: #{complex_batchnorm1d.1} parent=27 // pred_check
                _
              $region52: #{complex_batchnorm1d.1} parent=27 // pred_check_branch
                %231 = sbr.rel target = $region54
              $region53: #{complex_batchnorm1d.1} parent=27 // pred_region
                _
              $region54: #{complex_batchnorm1d.1} parent=27 // pred_fallthru
                _
            $region28: #{complex_batchnorm1d.1} parent=23 // pred_fallthru
              _
            // Predicated region
            $region29: #{complex_batchnorm1d.1} parent=23 // pred_check
              _
            $region30: #{complex_batchnorm1d.1} parent=23 // pred_check_branch
              %201 = sbr.rel target = $region32
            $region31: #{complex_batchnorm1d.1} parent=23 // pred_region
              %s203 = ssub.s32 256, 1
              loop: start=0, step=1, limit=1
              $region33: #{complex_batchnorm1d.1} parent=31 // loop_pre_header
                _
              $region34: #{complex_batchnorm1d.1} parent=31 // loop_header
                %s205 = sphi 0, %s209
                %p206 = scmp.ge.s32.totalorder %s205, 1
                %s210 = sphi %s195, %s195
                %s211 = sphi %s193, %s193
              $region35: #{complex_batchnorm1d.1} parent=31 // loop_header_branch
                %208 = sbr.rel (%p206) target = $region39
              $region36: #{complex_batchnorm1d.1} parent=31 // loop_body
                %v212 = vld [vmem:[%s210] sm:%s203]
                %213 = vst [vmem:[%s211] sm:%s203] %v212
                %v214 = vld [vmem:[%s210 + $0x10] sm:%s203]
                %215 = vst [vmem:[%s211 + $0x8] sm:%s203] %v214
              $region37: #{complex_batchnorm1d.1} parent=31 // loop_footer
                %s209 = sadd.s32 1, %s205
              $region38: #{complex_batchnorm1d.1} parent=31 // loop_footer_branch
                %204 = sbr.rel target = $region34
              $region39: #{complex_batchnorm1d.1} parent=31 // loop_exit
                _
            $region32: #{complex_batchnorm1d.1} parent=23 // pred_fallthru
              _
          $region24: #{complex_batchnorm1d.1} parent=19 // pred_fallthru
            _
          %232 = vnop
        $region20: #{complex_batchnorm1d.1} parent=15 // pred_fallthru
          _
        // Predicated region
        $region55: #{complex_batchnorm1d.1} parent=15 // pred_check
          %p233 = pneg %p58
        $region56: #{complex_batchnorm1d.1} parent=15 // pred_check_branch
          %235 = sbr.rel (%p233) target = $region58
        $region57: #{complex_batchnorm1d.1} parent=15 // pred_region
          %s236 = sand.u32 %s48, 1
          %s237 = sand.u32 %s48, 1
          %s238 = smul.addr %s237, 16
          %s239 = scalar_lea.vmem [#allocation3], %s238
          %s240 = smul.addr %s12, 8
          %s241 = scalar_lea.vmem %s1, %s240
          // Predicated region
          $region59: #{complex_batchnorm1d.1} parent=57 // pred_check
            _
          $region60: #{complex_batchnorm1d.1} parent=57 // pred_check_branch
            %243 = sbr.rel (0) target = $region62
          $region61: #{complex_batchnorm1d.1} parent=57 // pred_region
            // Predicated region
            $region63: #{complex_batchnorm1d.1} parent=61 // pred_check
              _
            $region64: #{complex_batchnorm1d.1} parent=61 // pred_check_branch
              %245 = sbr.rel (0) target = $region66
            $region65: #{complex_batchnorm1d.1} parent=61 // pred_region
              // Predicated region
              $region78: #{complex_batchnorm1d.1} parent=65 // pred_check
                _
              $region79: #{complex_batchnorm1d.1} parent=65 // pred_check_branch
                %263 = sbr.rel (0) target = $region81
              $region80: #{complex_batchnorm1d.1} parent=65 // pred_region
                loop: start=0, step=1, limit=1
                $region82: #{complex_batchnorm1d.1} parent=80 // loop_pre_header
                  _
                $region83: #{complex_batchnorm1d.1} parent=80 // loop_header
                  %s265 = sphi 0, %s269
                  %p266 = scmp.ge.s32.totalorder %s265, 1
                  %s270 = sphi %s241, %s241
                  %s271 = sphi %s239, %s239
                $region84: #{complex_batchnorm1d.1} parent=80 // loop_header_branch
                  %268 = sbr.rel (%p266) target = $region88
                $region85: #{complex_batchnorm1d.1} parent=80 // loop_body
                  %v272 = vld [vmem:[%s270] sm:$0xff]
                  %273 = vst [vmem:[%s271] sm:$0xff] %v272
                  %v274 = vld [vmem:[%s270 + $0x10] sm:$0xff]
                  %275 = vst [vmem:[%s271 + $0x8] sm:$0xff] %v274
                $region86: #{complex_batchnorm1d.1} parent=80 // loop_footer
                  %s269 = sadd.s32 1, %s265
                $region87: #{complex_batchnorm1d.1} parent=80 // loop_footer_branch
                  %264 = sbr.rel target = $region83
                $region88: #{complex_batchnorm1d.1} parent=80 // loop_exit
                  _
              $region81: #{complex_batchnorm1d.1} parent=65 // pred_fallthru
                _
              // Predicated region
              $region89: #{complex_batchnorm1d.1} parent=65 // pred_check
                _
              $region90: #{complex_batchnorm1d.1} parent=65 // pred_check_branch
                %277 = sbr.rel target = $region92
              $region91: #{complex_batchnorm1d.1} parent=65 // pred_region
                _
              $region92: #{complex_batchnorm1d.1} parent=65 // pred_fallthru
                _
            $region66: #{complex_batchnorm1d.1} parent=61 // pred_fallthru
              _
            // Predicated region
            $region67: #{complex_batchnorm1d.1} parent=61 // pred_check
              _
            $region68: #{complex_batchnorm1d.1} parent=61 // pred_check_branch
              %247 = sbr.rel target = $region70
            $region69: #{complex_batchnorm1d.1} parent=61 // pred_region
              %s249 = ssub.s32 256, 1
              loop: start=0, step=1, limit=1
              $region71: #{complex_batchnorm1d.1} parent=69 // loop_pre_header
                _
              $region72: #{complex_batchnorm1d.1} parent=69 // loop_header
                %s251 = sphi 0, %s255
                %p252 = scmp.ge.s32.totalorder %s251, 1
                %s256 = sphi %s241, %s241
                %s257 = sphi %s239, %s239
              $region73: #{complex_batchnorm1d.1} parent=69 // loop_header_branch
                %254 = sbr.rel (%p252) target = $region77
              $region74: #{complex_batchnorm1d.1} parent=69 // loop_body
                %v258 = vld [vmem:[%s256] sm:%s249]
                %259 = vst [vmem:[%s257] sm:%s249] %v258
                %v260 = vld [vmem:[%s256 + $0x10] sm:%s249]
                %261 = vst [vmem:[%s257 + $0x8] sm:%s249] %v260
              $region75: #{complex_batchnorm1d.1} parent=69 // loop_footer
                %s255 = sadd.s32 1, %s251
              $region76: #{complex_batchnorm1d.1} parent=69 // loop_footer_branch
                %250 = sbr.rel target = $region72
              $region77: #{complex_batchnorm1d.1} parent=69 // loop_exit
                _
            $region70: #{complex_batchnorm1d.1} parent=61 // pred_fallthru
              _
          $region62: #{complex_batchnorm1d.1} parent=57 // pred_fallthru
            _
          %278 = vnop
        $region58: #{complex_batchnorm1d.1} parent=15 // pred_fallthru
          _
        // Predicated region
        $region93: #{complex_batchnorm1d.1} parent=15 // pred_check
          %p279 = pneg %p84
        $region94: #{complex_batchnorm1d.1} parent=15 // pred_check_branch
          %281 = sbr.rel (%p279) target = $region96
        $region95: #{complex_batchnorm1d.1} parent=15 // pred_region
          %p282 = scmp.lt.s32.totalorder %s12, 1
          %s283 = scalar_select %p282, %s12, 1
          %s284 = smul.addr %s283, 8
          %s285 = scalar_lea.vmem %s2, %s284
        $region96: #{complex_batchnorm1d.1} parent=15 // pred_fallthru
          _
      $region16: #{complex_batchnorm1d.1} parent=5 // pred_fallthru
        _
      %p286 = scmp.le.s32.totalorder 1, %s12
      %p287 = scmp.lt.s32.totalorder %s12, 3
      %p288 = pnand %p286, %p287
      %p289 = pneg %p288
      // Predicated region
      $region97: #{complex_batchnorm1d.1} parent=5 // pred_check
        _
      $region98: #{complex_batchnorm1d.1} parent=5 // pred_check_branch
        %291 = sbr.rel (%p288) target = $region100
      $region99: #{complex_batchnorm1d.1} parent=5 // pred_region
        %s292 = ssub.s32 %s12, 1
        %s293 = sand.u32 %s25, 1
        %s294 = sand.u32 %s25, 1
        %s295 = smul.addr %s294, 16
        %s296 = scalar_lea.vmem [#allocation2], %s295
        // Predicated region
        $region101: #{complex_batchnorm1d.1} parent=99 // pred_check
          %p297 = pneg %p38
        $region102: #{complex_batchnorm1d.1} parent=99 // pred_check_branch
          %299 = sbr.rel (%p297) target = $region104
        $region103: #{complex_batchnorm1d.1} parent=99 // pred_region
          _
        $region104: #{complex_batchnorm1d.1} parent=99 // pred_fallthru
          _
        %s300 = sand.u32 %s51, 1
        %s301 = sand.u32 %s51, 1
        %s302 = smul.addr %s301, 16
        %s303 = scalar_lea.vmem [#allocation3], %s302
        // Predicated region
        $region105: #{complex_batchnorm1d.1} parent=99 // pred_check
          %p304 = pneg %p64
        $region106: #{complex_batchnorm1d.1} parent=99 // pred_check_branch
          %306 = sbr.rel (%p304) target = $region108
        $region107: #{complex_batchnorm1d.1} parent=99 // pred_region
          _
        $region108: #{complex_batchnorm1d.1} parent=99 // pred_fallthru
          _
        %s307 = sand.u32 %s25, 1
        %s308 = sand.u32 %s25, 1
        %s309 = smul.addr %s308, 16
        %s310 = scalar_lea.vmem [#allocation2], %s309
        %p311 = pneg %p38
        %p312 = pneg %p35
        %s313 = sand.u32 %s51, 1
        %s314 = sand.u32 %s51, 1
        %s315 = smul.addr %s314, 16
        %s316 = scalar_lea.vmem [#allocation3], %s315
        %p317 = pneg %p64
        %p318 = pneg %p61
        %p319 = scmp.lt.s32.totalorder %s17, 1
        %s320 = scalar_select %p319, %s17, 1
        %s321 = smul.addr %s320, 8
        %s322 = scalar_lea.vmem %s2, %s321
        %p323 = pneg %p90
        %p324 = pneg %p87
        %p325 = pneg %p116
        %p326 = pneg %p113
        %s327 = sand.u32 %s103, 1
        %s328 = sand.u32 %s103, 1
        %s329 = smul.addr %s328, 16
        %s330 = scalar_lea.vmem [#allocation4], %s329
        %p331 = pneg %p142
        %p332 = pneg %p139
        %s333 = sand.u32 %s129, 1
        %s334 = sand.u32 %s129, 1
        %s335 = smul.addr %s334, 16
        %s336 = scalar_lea.vmem [#allocation5], %s335
        %p337 = pneg %p168
        %p338 = pneg %p165
        %p339 = scmp.lt.s32.totalorder %s17, 1
        %s340 = scalar_select %p339, %s17, 1
        %s341 = smul.addr %s340, 8
        %s342 = scalar_lea.vmem %s5, %s341
        %p343 = scmp.lt.s32.totalorder %s17, 1
        %s344 = scalar_select %p343, %s17, 1
        %s345 = smul.addr %s344, 8
        %s346 = scalar_lea.vmem %s2, %s345
        %p347 = scmp.lt.s32.totalorder %s17, 1
        %s348 = scalar_select %p347, %s17, 1
        %s349 = smul.addr %s348, 8
        %s350 = scalar_lea.vmem %s5, %s349
        %v351 = vld [vmem:[%s296] sm:$0xff]
        %v352 = vld [vmem:[%s296 + $0x8] sm:$0xff]
        %v353 = vld [vmem:[%s303] sm:$0xff]
        %v354 = vld [vmem:[%s303 + $0x8] sm:$0xff]
        %355 = vadd.xlane.f32.xlu0 %v351
        %v356 = vpop.xlane.xlu0 %355
        %357 = vadd.xlane.f32.xlu0 %v352
        %v358 = vpop.xlane.xlu0 %357
        %v359 = vadd.f32 %v356, %v358
        %v360 = vmul.f32 %v359, 0.00390625
        %361 = vadd.xlane.f32.xlu0 %v353
        %v362 = vpop.xlane.xlu0 %361
        %363 = vadd.xlane.f32.xlu0 %v354
        %v364 = vpop.xlane.xlu0 %363
        %v365 = vadd.f32 %v362, %v364
        %v366 = vmul.f32 %v365, 0.00390625
        %v367 = vmul.f32 %v351, %v351
        %v368 = vmul.f32 %v352, %v352
        %369 = vadd.xlane.f32.xlu0 %v367
        %v370 = vpop.xlane.xlu0 %369
        %371 = vadd.xlane.f32.xlu0 %v368
        %v372 = vpop.xlane.xlu0 %371
        %v373 = vadd.f32 %v370, %v372
        %v374 = vmul.f32 %v373, 0.00390625
        %v375 = vmul.f32 %v360, %v360
        %v376 = vsub.f32 %v374, %v375
        %v377 = vadd.f32 %v376, 1e-05
        %v378 = vmul.f32 %v353, %v353
        %v379 = vmul.f32 %v354, %v354
        %380 = vadd.xlane.f32.xlu0 %v378
        %v381 = vpop.xlane.xlu0 %380
        %382 = vadd.xlane.f32.xlu0 %v379
        %v383 = vpop.xlane.xlu0 %382
        %v384 = vadd.f32 %v381, %v383
        %v385 = vmul.f32 %v384, 0.00390625
        %v386 = vmul.f32 %v366, %v366
        %v387 = vsub.f32 %v385, %v386
        %v388 = vadd.f32 %v387, 1e-05
        %v389 = vmul.f32 %v351, %v353
        %v390 = vmul.f32 %v352, %v354
        %391 = vadd.xlane.f32.xlu0 %v389
        %v392 = vpop.xlane.xlu0 %391
        %393 = vadd.xlane.f32.xlu0 %v390
        %v394 = vpop.xlane.xlu0 %393
        %v395 = vadd.f32 %v392, %v394
        %v396 = vmul.f32 %v395, 0.00390625
        %v397 = vmul.f32 %v360, %v366
        %v398 = vsub.f32 %v396, %v397
        %v399 = vmul.f32 %v377, %v388
        %v400 = vmul.f32 %v398, %v398
        %v401 = vsub.f32 %v399, %v400
        %v402 = vrsqrt.pop %v401
        %v403 = vmul.f32 %v401, %v402
        %vm404 = vcmp.eq.f32.partialorder %v401, inf
        %v405 = vsel %vm404, %v401, %v403
        %vm406 = vcmp.eq.f32.partialorder %v401, 0.0
        %v407 = vand.u32 %v401, 2147483648
        %v408 = vsel %vm406, %v407, %v405
        %v409 = vadd.f32 %v377, %v388
        %v410 = vmul.f32 %v408, 2.0
        %v411 = vadd.f32 %v409, %v410
        %v412 = vrsqrt.pop %v411
        %v413 = vmul.f32 %v411, %v412
        %vm414 = vcmp.eq.f32.partialorder %v411, inf
        %v415 = vsel %vm414, %v411, %v413
        %vm416 = vcmp.eq.f32.partialorder %v411, 0.0
        %v417 = vand.u32 %v411, 2147483648
        %v418 = vsel %vm416, %v417, %v415
        %v419 = vmul.f32 %v408, %v418
        %v420 = vrcp.pop %v419
        %v421 = vmul.f32 1.0, %v420
        %v422 = vadd.f32 %v388, %v408
        %v423 = vmul.f32 %v422, %v421
        %v424 = vadd.f32 %v377, %v408
        %v425 = vmul.f32 %v424, %v421
        %v426 = vsub.f32 0.0, %v398
        %v427 = vmul.f32 %v426, %v421
        %v428 = vld [vmem:[%s346] sm:$0xff]
        %v429 = vmul.f32 %v428, %v423
        %v430 = vmul.f32 %v428, %v427
        %432 = vrot.lane.b32.xlu0 %v430, 126
        %v433 = vpop.permute.xlu0 %432
        %v435 = vadd.f32 %v429, %v433
        %v436 = vmul.f32 %v428, %v425
        %438 = vrot.lane.b32.xlu0 %v436, 126
        %v439 = vpop.permute.xlu0 %438
        %v441 = vadd.f32 %v430, %v439
        %442 = vrot.lane.b32.xlu0 %v430, 1
        %v443 = vpop.permute.xlu0 %442
        %v445 = vadd.f32 %v429, %v443
        %446 = vrot.lane.b32.xlu0 %v436, 1
        %v447 = vpop.permute.xlu0 %446
        %v449 = vadd.f32 %v430, %v447
        %v450 = vmul.f32 %v435, %v360
        %v451 = vmul.f32 %v441, %v366
        %v452 = vadd.f32 %v450, %v451
        %454 = vrot.lane.b32.xlu0 %v452, 3
        %v455 = vpop.permute.xlu0 %454
        %v457 = vsub.f32 %v428, %v455
        %v458 = vmul.f32 %v445, %v360
        %v459 = vmul.f32 %v449, %v366
        %v460 = vadd.f32 %v458, %v459
        %462 = vrot.lane.b32.xlu0 %v460, 2
        %v463 = vpop.permute.xlu0 %462
        %v465 = vsub.f32 %v428, %v463
        %467 = vset.pattern.permute.xlu0 0
        %468 = vperm.xlu0 %467, %v435
        %v469 = vpop.permute.xlu0 %468
        %v471 = vmul.f32 %v469, %v351
        %v472 = vmul.f32 %v469, %v352
        %474 = vset.pattern.permute.xlu0 0
        %475 = vperm.xlu0 %474, %v441
        %v476 = vpop.permute.xlu0 %475
        %v478 = vmul.f32 %v476, %v353
        %v479 = vmul.f32 %v476, %v354
        %v480 = vadd.f32 %v471, %v478
        %v481 = vadd.f32 %v472, %v479
        %483 = vset.pattern.permute.xlu0 3
        %484 = vperm.xlu0 %483, %v457
        %v485 = vpop.permute.xlu0 %484
        %v487 = vadd.f32 %v480, %v485
        %v488 = vadd.f32 %v481, %v485
        %489 = vst [vmem:[%s330] sm:$0xff] %v487
        %490 = vst [vmem:[%s330 + $0x8] sm:$0xff] %v488
        %492 = vset.pattern.permute.xlu0 2
        %493 = vperm.xlu0 %492, %v445
        %v494 = vpop.permute.xlu0 %493
        %v496 = vmul.f32 %v494, %v351
        %v497 = vmul.f32 %v494, %v352
        %499 = vset.pattern.permute.xlu0 2
        %500 = vperm.xlu0 %499, %v449
        %v501 = vpop.permute.xlu0 %500
        %v503 = vmul.f32 %v501, %v353
        %v504 = vmul.f32 %v501, %v354
        %v505 = vadd.f32 %v496, %v503
        %v506 = vadd.f32 %v497, %v504
        %508 = vset.pattern.permute.xlu0 4
        %509 = vperm.xlu0 %508, %v465
        %v510 = vpop.permute.xlu0 %509
        %v512 = vadd.f32 %v505, %v510
        %v513 = vadd.f32 %v506, %v510
        %514 = vst [vmem:[%s336] sm:$0xff] %v512
        %515 = vst [vmem:[%s336 + $0x8] sm:$0xff] %v513
        %v516 = vlaneseq
        %v517 = vand.u32 %v516, 127
        %vm518 = vcmp.eq.s32.totalorder %v517, 0
        %v519 = vsel %vm518, %v360, 0.0
        %vm520 = vcmp.eq.s32.totalorder %v517, 1
        %v521 = vsel %vm520, %v366, %v519
        %vm522 = vcmp.eq.s32.totalorder %v517, 2
        %v523 = vsel %vm522, %v377, %v521
        %vm524 = vcmp.eq.s32.totalorder %v517, 3
        %v525 = vsel %vm524, %v388, %v523
        %vm526 = vcmp.eq.s32.totalorder %v517, 4
        %v527 = vsel %vm526, %v398, %v525
        %vm528 = vcmask 64512
        %529 = vst.msk [vmem:[%s350] sm:$0xff] %vm528, %v527
        %s530 = sand.u32 %s103, 1
        %s531 = sand.u32 %s103, 1
        %s532 = smul.addr %s531, 16
        %s533 = scalar_lea.vmem [#allocation4], %s532
        %s534 = sand.u32 %s129, 1
        %s535 = sand.u32 %s129, 1
        %s536 = smul.addr %s535, 16
        %s537 = scalar_lea.vmem [#allocation5], %s536
        %p538 = scmp.lt.s32.totalorder %s17, 1
        %s539 = scalar_select %p538, %s17, 1
        %s540 = smul.addr %s539, 8
        %s541 = scalar_lea.vmem %s5, %s540
        // Predicated region
        $region109: #{complex_batchnorm1d.1} parent=99 // pred_check
          %p542 = pneg %p113
        $region110: #{complex_batchnorm1d.1} parent=99 // pred_check_branch
          %544 = sbr.rel (%p542) target = $region112
        $region111: #{complex_batchnorm1d.1} parent=99 // pred_region
          %s545 = smul.addr %s17, 8
          %s546 = scalar_lea.vmem %s3, %s545
          // Predicated region
          $region113: #{complex_batchnorm1d.1} parent=111 // pred_check
            _
          $region114: #{complex_batchnorm1d.1} parent=111 // pred_check_branch
            %548 = sbr.rel (0) target = $region116
          $region115: #{complex_batchnorm1d.1} parent=111 // pred_region
            // Predicated region
            $region117: #{complex_batchnorm1d.1} parent=115 // pred_check
              _
            $region118: #{complex_batchnorm1d.1} parent=115 // pred_check_branch
              %550 = sbr.rel (0) target = $region120
            $region119: #{complex_batchnorm1d.1} parent=115 // pred_region
              // Predicated region
              $region132: #{complex_batchnorm1d.1} parent=119 // pred_check
                _
              $region133: #{complex_batchnorm1d.1} parent=119 // pred_check_branch
                %568 = sbr.rel (0) target = $region135
              $region134: #{complex_batchnorm1d.1} parent=119 // pred_region
                loop: start=0, step=1, limit=1
                $region136: #{complex_batchnorm1d.1} parent=134 // loop_pre_header
                  _
                $region137: #{complex_batchnorm1d.1} parent=134 // loop_header
                  %s570 = sphi 0, %s574
                  %p571 = scmp.ge.s32.totalorder %s570, 1
                  %s575 = sphi %s533, %s533
                  %s576 = sphi %s546, %s546
                $region138: #{complex_batchnorm1d.1} parent=134 // loop_header_branch
                  %573 = sbr.rel (%p571) target = $region142
                $region139: #{complex_batchnorm1d.1} parent=134 // loop_body
                  %v577 = vld [vmem:[%s575] sm:$0xff]
                  %578 = vst [vmem:[%s576] sm:$0xff] %v577
                  %v579 = vld [vmem:[%s575 + $0x8] sm:$0xff]
                  %580 = vst [vmem:[%s576 + $0x10] sm:$0xff] %v579
                $region140: #{complex_batchnorm1d.1} parent=134 // loop_footer
                  %s574 = sadd.s32 1, %s570
                $region141: #{complex_batchnorm1d.1} parent=134 // loop_footer_branch
                  %569 = sbr.rel target = $region137
                $region142: #{complex_batchnorm1d.1} parent=134 // loop_exit
                  _
              $region135: #{complex_batchnorm1d.1} parent=119 // pred_fallthru
                _
              // Predicated region
              $region143: #{complex_batchnorm1d.1} parent=119 // pred_check
                _
              $region144: #{complex_batchnorm1d.1} parent=119 // pred_check_branch
                %582 = sbr.rel target = $region146
              $region145: #{complex_batchnorm1d.1} parent=119 // pred_region
                _
              $region146: #{complex_batchnorm1d.1} parent=119 // pred_fallthru
                _
            $region120: #{complex_batchnorm1d.1} parent=115 // pred_fallthru
              _
            // Predicated region
            $region121: #{complex_batchnorm1d.1} parent=115 // pred_check
              _
            $region122: #{complex_batchnorm1d.1} parent=115 // pred_check_branch
              %552 = sbr.rel target = $region124
            $region123: #{complex_batchnorm1d.1} parent=115 // pred_region
              %s554 = ssub.s32 256, 1
              loop: start=0, step=1, limit=1
              $region125: #{complex_batchnorm1d.1} parent=123 // loop_pre_header
                _
              $region126: #{complex_batchnorm1d.1} parent=123 // loop_header
                %s556 = sphi 0, %s560
                %p557 = scmp.ge.s32.totalorder %s556, 1
                %s561 = sphi %s533, %s533
                %s562 = sphi %s546, %s546
              $region127: #{complex_batchnorm1d.1} parent=123 // loop_header_branch
                %559 = sbr.rel (%p557) target = $region131
              $region128: #{complex_batchnorm1d.1} parent=123 // loop_body
                %v563 = vld [vmem:[%s561] sm:%s554]
                %564 = vst [vmem:[%s562] sm:%s554] %v563
                %v565 = vld [vmem:[%s561 + $0x8] sm:%s554]
                %566 = vst [vmem:[%s562 + $0x10] sm:%s554] %v565
              $region129: #{complex_batchnorm1d.1} parent=123 // loop_footer
                %s560 = sadd.s32 1, %s556
              $region130: #{complex_batchnorm1d.1} parent=123 // loop_footer_branch
                %555 = sbr.rel target = $region126
              $region131: #{complex_batchnorm1d.1} parent=123 // loop_exit
                _
            $region124: #{complex_batchnorm1d.1} parent=115 // pred_fallthru
              _
          $region116: #{complex_batchnorm1d.1} parent=111 // pred_fallthru
            _
          %583 = vnop
        $region112: #{complex_batchnorm1d.1} parent=99 // pred_fallthru
          _
        // Predicated region
        $region147: #{complex_batchnorm1d.1} parent=99 // pred_check
          %p584 = pneg %p139
        $region148: #{complex_batchnorm1d.1} parent=99 // pred_check_branch
          %586 = sbr.rel (%p584) target = $region150
        $region149: #{complex_batchnorm1d.1} parent=99 // pred_region
          %s587 = smul.addr %s17, 8
          %s588 = scalar_lea.vmem %s4, %s587
          // Predicated region
          $region151: #{complex_batchnorm1d.1} parent=149 // pred_check
            _
          $region152: #{complex_batchnorm1d.1} parent=149 // pred_check_branch
            %590 = sbr.rel (0) target = $region154
          $region153: #{complex_batchnorm1d.1} parent=149 // pred_region
            // Predicated region
            $region155: #{complex_batchnorm1d.1} parent=153 // pred_check
              _
            $region156: #{complex_batchnorm1d.1} parent=153 // pred_check_branch
              %592 = sbr.rel (0) target = $region158
            $region157: #{complex_batchnorm1d.1} parent=153 // pred_region
              // Predicated region
              $region170: #{complex_batchnorm1d.1} parent=157 // pred_check
                _
              $region171: #{complex_batchnorm1d.1} parent=157 // pred_check_branch
                %610 = sbr.rel (0) target = $region173
              $region172: #{complex_batchnorm1d.1} parent=157 // pred_region
                loop: start=0, step=1, limit=1
                $region174: #{complex_batchnorm1d.1} parent=172 // loop_pre_header
                  _
                $region175: #{complex_batchnorm1d.1} parent=172 // loop_header
                  %s612 = sphi 0, %s616
                  %p613 = scmp.ge.s32.totalorder %s612, 1
                  %s617 = sphi %s537, %s537
                  %s618 = sphi %s588, %s588
                $region176: #{complex_batchnorm1d.1} parent=172 // loop_header_branch
                  %615 = sbr.rel (%p613) target = $region180
                $region177: #{complex_batchnorm1d.1} parent=172 // loop_body
                  %v619 = vld [vmem:[%s617] sm:$0xff]
                  %620 = vst [vmem:[%s618] sm:$0xff] %v619
                  %v621 = vld [vmem:[%s617 + $0x8] sm:$0xff]
                  %622 = vst [vmem:[%s618 + $0x10] sm:$0xff] %v621
                $region178: #{complex_batchnorm1d.1} parent=172 // loop_footer
                  %s616 = sadd.s32 1, %s612
                $region179: #{complex_batchnorm1d.1} parent=172 // loop_footer_branch
                  %611 = sbr.rel target = $region175
                $region180: #{complex_batchnorm1d.1} parent=172 // loop_exit
                  _
              $region173: #{complex_batchnorm1d.1} parent=157 // pred_fallthru
                _
              // Predicated region
              $region181: #{complex_batchnorm1d.1} parent=157 // pred_check
                _
              $region182: #{complex_batchnorm1d.1} parent=157 // pred_check_branch
                %624 = sbr.rel target = $region184
              $region183: #{complex_batchnorm1d.1} parent=157 // pred_region
                _
              $region184: #{complex_batchnorm1d.1} parent=157 // pred_fallthru
                _
            $region158: #{complex_batchnorm1d.1} parent=153 // pred_fallthru
              _
            // Predicated region
            $region159: #{complex_batchnorm1d.1} parent=153 // pred_check
              _
            $region160: #{complex_batchnorm1d.1} parent=153 // pred_check_branch
              %594 = sbr.rel target = $region162
            $region161: #{complex_batchnorm1d.1} parent=153 // pred_region
              %s596 = ssub.s32 256, 1
              loop: start=0, step=1, limit=1
              $region163: #{complex_batchnorm1d.1} parent=161 // loop_pre_header
                _
              $region164: #{complex_batchnorm1d.1} parent=161 // loop_header
                %s598 = sphi 0, %s602
                %p599 = scmp.ge.s32.totalorder %s598, 1
                %s603 = sphi %s537, %s537
                %s604 = sphi %s588, %s588
              $region165: #{complex_batchnorm1d.1} parent=161 // loop_header_branch
                %601 = sbr.rel (%p599) target = $region169
              $region166: #{complex_batchnorm1d.1} parent=161 // loop_body
                %v605 = vld [vmem:[%s603] sm:%s596]
                %606 = vst [vmem:[%s604] sm:%s596] %v605
                %v607 = vld [vmem:[%s603 + $0x8] sm:%s596]
                %608 = vst [vmem:[%s604 + $0x10] sm:%s596] %v607
              $region167: #{complex_batchnorm1d.1} parent=161 // loop_footer
                %s602 = sadd.s32 1, %s598
              $region168: #{complex_batchnorm1d.1} parent=161 // loop_footer_branch
                %597 = sbr.rel target = $region164
              $region169: #{complex_batchnorm1d.1} parent=161 // loop_exit
                _
            $region162: #{complex_batchnorm1d.1} parent=153 // pred_fallthru
              _
          $region154: #{complex_batchnorm1d.1} parent=149 // pred_fallthru
            _
          %625 = vnop
        $region150: #{complex_batchnorm1d.1} parent=99 // pred_fallthru
          _
        // Predicated region
        $region185: #{complex_batchnorm1d.1} parent=99 // pred_check
          %p626 = pneg %p165
        $region186: #{complex_batchnorm1d.1} parent=99 // pred_check_branch
          %628 = sbr.rel (%p626) target = $region188
        $region187: #{complex_batchnorm1d.1} parent=99 // pred_region
          _
        $region188: #{complex_batchnorm1d.1} parent=99 // pred_fallthru
          _
      $region100: #{complex_batchnorm1d.1} parent=5 // pred_fallthru
        _
      %p629 = scmp.le.s32.totalorder 2, %s12
      // Predicated region
      $region189: #{complex_batchnorm1d.1} parent=5 // pred_check
        %p630 = pneg %p629
      $region190: #{complex_batchnorm1d.1} parent=5 // pred_check_branch
        %632 = sbr.rel (%p630) target = $region192
      $region191: #{complex_batchnorm1d.1} parent=5 // pred_region
        %s633 = ssub.s32 %s12, 2
        // Predicated region
        $region193: #{complex_batchnorm1d.1} parent=191 // pred_check
          %p634 = pneg %p119
        $region194: #{complex_batchnorm1d.1} parent=191 // pred_check_branch
          %636 = sbr.rel (%p634) target = $region196
        $region195: #{complex_batchnorm1d.1} parent=191 // pred_region
          %s637 = sand.u32 %s104, 1
          %s638 = sand.u32 %s104, 1
          %s639 = smul.addr %s638, 16
          %s640 = scalar_lea.vmem [#allocation4], %s639
        $region196: #{complex_batchnorm1d.1} parent=191 // pred_fallthru
          _
        // Predicated region
        $region197: #{complex_batchnorm1d.1} parent=191 // pred_check
          %p641 = pneg %p145
        $region198: #{complex_batchnorm1d.1} parent=191 // pred_check_branch
          %643 = sbr.rel (%p641) target = $region200
        $region199: #{complex_batchnorm1d.1} parent=191 // pred_region
          %s644 = sand.u32 %s130, 1
          %s645 = sand.u32 %s130, 1
          %s646 = smul.addr %s645, 16
          %s647 = scalar_lea.vmem [#allocation5], %s646
        $region200: #{complex_batchnorm1d.1} parent=191 // pred_fallthru
          _
        // Predicated region
        $region201: #{complex_batchnorm1d.1} parent=191 // pred_check
          %p648 = pneg %p171
        $region202: #{complex_batchnorm1d.1} parent=191 // pred_check_branch
          %650 = sbr.rel (%p648) target = $region204
        $region203: #{complex_batchnorm1d.1} parent=191 // pred_region
          %p651 = scmp.lt.s32.totalorder %s18, 1
          %s652 = scalar_select %p651, %s18, 1
          %s653 = smul.addr %s652, 8
          %s654 = scalar_lea.vmem %s5, %s653
        $region204: #{complex_batchnorm1d.1} parent=191 // pred_fallthru
          _
      $region192: #{complex_batchnorm1d.1} parent=5 // pred_fallthru
        _
    $region6: #{complex_batchnorm1d.1} parent=1 // loop_footer
      %s16 = sadd.s32 1, %s12
    $region7: #{complex_batchnorm1d.1} parent=1 // loop_footer_branch
      %11 = sbr.rel target = $region3
    $region8: #{complex_batchnorm1d.1} parent=1 // loop_exit
      _

</llo_original>
